<compile_context>
chip_gen: v5e
topology: v5e:2x2
jax: 0.10.0
libtpu: 0.0.40
codegen_flags: <defaults>
</compile_context>

<pallas_src>
import jax
import jax.numpy as jnp
from jax.experimental import pallas as pl
from jax.experimental.pallas import tpu as pltpu


def _round_up(x, m):
    return (x + m - 1) // m * m


def _vq_kernel(x_ref, embed_ref, esq_ref, q_ref, idx_ref):
    x = x_ref[...]                                  # (tm, D)  input dtype
    e = embed_ref[...]                              # (K, D)   codebook (resident)
    e_sq = esq_ref[...]                             # (K, 1)   f32, precomputed
    K = e.shape[0]
    tm = x.shape[0]

    # d[k, n] = ||e_k||^2 - 2 <e_k, x_n>   (||x_n||^2 omitted: per-column const)
    xeT = jax.lax.dot_general(
        e, x, (((1,), (1,)), ((), ())),
        preferred_element_type=jnp.float32)         # (K, tm) on the MXU
    d = e_sq - 2.0 * xeT                            # (K, tm)

    # argmin over the codebook axis (sublanes); first-index tie-break matches
    # torch.argmin. Result is (1, tm): lane-dense, unmasked store.
    min_d = jnp.min(d, axis=0, keepdims=True)                              # (1, tm)
    iota = jax.lax.broadcasted_iota(jnp.int32, (K, tm), 0)                 # (K, tm)
    idx = jnp.min(jnp.where(d == min_d, iota, K), axis=0, keepdims=True)   # (1, tm)
    idx_ref[...] = idx.astype(jnp.int32)

    # quantize = one_hot(idx)^T @ embed : MXU gather of nearest codebook rows,
    # done with a transposed-LHS contraction so no relayout is needed.
    encT = (iota == idx).astype(e.dtype)            # (K, tm) one-hot columns
    q = jax.lax.dot_general(
        encT, e, (((0,), (0,)), ((), ())),
        preferred_element_type=jnp.float32)         # (tm, D)
    q_ref[...] = q.astype(q_ref.dtype)


def soho_pre_vd_forward(inputs_flatten, embed, *, tm=512, apply_ste=False):
    """Eval-mode forward of SOHO_Pre_VD: returns (quantize, encoding_indices)."""
    N, D = inputs_flatten.shape
    K, D2 = embed.shape
    assert D == D2

    # Tile sizing: tm a multiple of 128 (lane-dense index slab), no larger than
    # the (row-padded) problem. Pad N up to a multiple of tm and K up to a
    # multiple of 128.
    tm_eff = min(_round_up(tm, 128), _round_up(N, 128))
    n_pad = _round_up(N, tm_eff)
    k_pad = _round_up(K, 128)

    x_p = inputs_flatten
    if n_pad != N:
        x_p = jnp.pad(inputs_flatten, ((0, n_pad - N), (0, 0)))
    e_p = embed
    if k_pad != K:
        e_p = jnp.pad(embed, ((0, k_pad - K), (0, 0)))

    # Squared codebook norms hoisted out of the kernel (computed once, resident
    # in VMEM). Padded rows get a huge norm so they can never win the argmin.
    e_sq = jnp.sum(e_p.astype(jnp.float32) ** 2, axis=1, keepdims=True)
    if k_pad != K:
        e_sq = e_sq.at[K:].set(jnp.float32(1e30))

    grid = (n_pad // tm_eff,)

    # VMEM budget estimate (double-buffered tiles + resident codebook +
    # transient (K, tm) distance / one-hot tiles). Clamped to v7x's 64 MiB.
    x_item = jnp.dtype(inputs_flatten.dtype).itemsize
    e_item = jnp.dtype(embed.dtype).itemsize
    vmem_est = (
        2 * tm_eff * D * x_item            # input tile (double buffered)
        + 2 * tm_eff * D * x_item          # quantize output tile
        + 2 * k_pad * D * e_item           # resident codebook
        + 2 * k_pad * 4                    # e_sq
        + 2 * tm_eff * 4                   # index tile
        + 4 * k_pad * tm_eff * 4           # transient distance / one-hot tiles
    )
    vmem_limit = int(min(max(2 * vmem_est, 32 * 1024 * 1024), 64 * 1024 * 1024))

    quantize_p, idx2 = pl.pallas_call(
        _vq_kernel,
        out_shape=(
            jax.ShapeDtypeStruct((n_pad, D), inputs_flatten.dtype),
            jax.ShapeDtypeStruct((grid[0], tm_eff), jnp.int32),
        ),
        grid_spec=pltpu.PrefetchScalarGridSpec(
            num_scalar_prefetch=0,
            grid=grid,
            in_specs=[
                pl.BlockSpec((tm_eff, D), lambda i: (i, 0)),   # input tile
                pl.BlockSpec((k_pad, D), lambda i: (0, 0)),    # full codebook, resident
                pl.BlockSpec((k_pad, 1), lambda i: (0, 0)),    # precomputed ||e||^2
            ],
            out_specs=[
                pl.BlockSpec((tm_eff, D), lambda i: (i, 0)),   # quantize tile
                pl.BlockSpec((1, tm_eff), lambda i: (i, 0)),   # lane-dense indices
            ],
        ),
        compiler_params=pltpu.CompilerParams(
            dimension_semantics=("parallel",),     # lets v7x shard N over both TCs
            vmem_limit_bytes=vmem_limit,
        ),
    )(x_p, e_p, e_sq)

    quantize = quantize_p[:N]
    encoding_indices = idx2.reshape(n_pad)[:N][:, None].astype(jnp.int32)

    if apply_ste:
        # Straight-through estimator (gradient-only; forward value unchanged).
        quantize = jax.lax.stop_gradient(quantize - inputs_flatten) + inputs_flatten
    return quantize, encoding_indices


def _reference_forward(x, embed):
    d = (jnp.sum(x ** 2, axis=1, keepdims=True)
         + jnp.sum(embed ** 2, axis=1)
         - 2.0 * x @ embed.T)
    idx = jnp.argmin(d, axis=1)[:, None]
    q = embed[idx[:, 0]]
    return q, idx


if __name__ == "__main__":
    # Module hyperparams (small, consistent with the forward's [N, token_dim] input):
    num_tokens = 8
    token_dim = 32
    N = 16  # e.g. batch=2 x seq=8 flattened

    key = jax.random.PRNGKey(0)
    k_x, k_e = jax.random.split(key)
    inputs_flatten = jax.random.normal(k_x, (N, token_dim), dtype=jnp.float32)
    # deterministic codebook init (nn.init.normal_ equivalent)
    embed = jax.random.normal(k_e, (num_tokens, token_dim), dtype=jnp.float32)

    quantize, encoding_indices = soho_pre_vd_forward(inputs_flatten, embed)
    jax.block_until_ready((quantize, encoding_indices))

    q_ref, idx_ref = _reference_forward(inputs_flatten, embed)
    assert jnp.array_equal(encoding_indices, idx_ref.astype(jnp.int32))
    assert jnp.allclose(quantize, q_ref, atol=1e-5, rtol=1e-5)

    print("KERNEL_OK")
</pallas_src>

<mosaic_0001>
module attributes {stable_mosaic.version = 11 : i64} {
  func.func @_vq_kernel(%arg0: i32, %arg1: memref<128x32xf32, #tpu.memory_space<vmem>>, %arg2: memref<128x32xf32, #tpu.memory_space<vmem>>, %arg3: memref<128x1xf32, #tpu.memory_space<vmem>>, %arg4: memref<128x32xf32, #tpu.memory_space<vmem>>, %arg5: memref<1x128xi32, #tpu.memory_space<vmem>>) attributes {dimension_semantics = [#tpu.dimension_semantics<parallel>], iteration_bounds = array<i64: 1>, scalar_prefetch = 0 : i64, scratch_operands = 0 : i64, tpu.core_type = #tpu.core_type<tc>, window_params = [{transform_indices = @transform_0, window_bounds = array<i64: 128, 32>}, {pipeline_mode = #tpu.pipeline_mode<synchronous>, transform_indices = @transform_1, window_bounds = array<i64: 128, 32>}, {pipeline_mode = #tpu.pipeline_mode<synchronous>, transform_indices = @transform_2, window_bounds = array<i64: 128, 1>}, {transform_indices = @transform_3, window_bounds = array<i64: 128, 32>}, {transform_indices = @transform_4, window_bounds = array<i64: 1, 128>}]} {
    %c0 = arith.constant 0 : index
    %c0_0 = arith.constant 0 : index
    %0 = vector.load %arg1[%c0, %c0_0] : memref<128x32xf32, #tpu.memory_space<vmem>>, vector<128x32xf32>
    %c0_1 = arith.constant 0 : index
    %c0_2 = arith.constant 0 : index
    %1 = vector.load %arg2[%c0_1, %c0_2] : memref<128x32xf32, #tpu.memory_space<vmem>>, vector<128x32xf32>
    %c0_3 = arith.constant 0 : index
    %c0_4 = arith.constant 0 : index
    %2 = vector.load %arg3[%c0_3, %c0_4] : memref<128x1xf32, #tpu.memory_space<vmem>>, vector<128x1xf32>
    %cst = arith.constant dense<0.000000e+00> : vector<128x128xf32>
    %3 = tpu.matmul %1, %0, %cst {dimension_numbers = #tpu.dot_dimension_numbers<[1], [1], [0], [0], [0, 0, 1, 0], [], []>} : vector<128x32xf32>, vector<128x32xf32>, vector<128x128xf32> -> vector<128x128xf32>
    %cst_5 = arith.constant 2.000000e+00 : f32
    %4 = vector.broadcast %cst_5 : f32 to vector<128x128xf32>
    %5 = arith.mulf %4, %3 : vector<128x128xf32>
    %6 = vector.broadcast %2 : vector<128x1xf32> to vector<128x128xf32>
    %7 = arith.subf %6, %5 : vector<128x128xf32>
    %cst_6 = arith.constant dense<0x7F800000> : vector<128xf32>
    %8 = vector.multi_reduction <minimumf>, %7, %cst_6 [0] : vector<128x128xf32> to vector<128xf32>
    %9 = vector.shape_cast %8 : vector<128xf32> to vector<1x128xf32>
    %10 = tpu.iota {dimensions = array<i32: 0>} : vector<128x128xi32>
    %11 = vector.broadcast %9 : vector<1x128xf32> to vector<128x128xf32>
    %12 = arith.cmpf oeq, %7, %11 : vector<128x128xf32>
    %c128_i32 = arith.constant 128 : i32
    %13 = vector.broadcast %c128_i32 : i32 to vector<128x128xi32>
    %14 = arith.select %12, %10, %13 : vector<128x128xi1>, vector<128x128xi32>
    %cst_7 = arith.constant dense<2147483647> : vector<128xi32>
    %15 = vector.multi_reduction <minsi>, %14, %cst_7 [0] : vector<128x128xi32> to vector<128xi32>
    %16 = vector.shape_cast %15 : vector<128xi32> to vector<1x128xi32>
    %c0_8 = arith.constant 0 : index
    %c0_9 = arith.constant 0 : index
    %17 = vector.load %arg5[%c0_8, %c0_9] : memref<1x128xi32, #tpu.memory_space<vmem>>, vector<1x128xi32>
    tpu.vector_store %arg5[%c0_8, %c0_9], %16 {strides = array<i32>} : memref<1x128xi32, #tpu.memory_space<vmem>>, vector<1x128xi32>,
    %18 = vector.broadcast %16 : vector<1x128xi32> to vector<128x128xi32>
    %19 = arith.cmpi eq, %10, %18 : vector<128x128xi32>
    %20 = arith.extui %19 : vector<128x128xi1> to vector<128x128xi32>
    %21 = arith.sitofp %20 : vector<128x128xi32> to vector<128x128xf32>
    %cst_10 = arith.constant dense<0.000000e+00> : vector<128x32xf32>
    %22 = tpu.matmul %21, %1, %cst_10 {dimension_numbers = #tpu.dot_dimension_numbers<[0], [0], [1], [1], [0, 1, 1, 1], [], []>} : vector<128x128xf32>, vector<128x32xf32>, vector<128x32xf32> -> vector<128x32xf32>
    %c0_11 = arith.constant 0 : index
    %c0_12 = arith.constant 0 : index
    %23 = vector.load %arg4[%c0_11, %c0_12] : memref<128x32xf32, #tpu.memory_space<vmem>>, vector<128x32xf32>
    tpu.vector_store %arg4[%c0_11, %c0_12], %22 {strides = array<i32>} : memref<128x32xf32, #tpu.memory_space<vmem>>, vector<128x32xf32>,
    return
  }
  func.func @transform_0(%arg0: i32) -> (i32, i32) {
    %c0_i32 = arith.constant 0 : i32
    %c0_i32_0 = arith.constant 0 : i32
    return %arg0, %c0_i32 : i32, i32
  }
  func.func @transform_1(%arg0: i32) -> (i32, i32) {
    %c0_i32 = arith.constant 0 : i32
    %c0_i32_0 = arith.constant 0 : i32
    %c0_i32_1 = arith.constant 0 : i32
    return %c0_i32, %c0_i32_0 : i32, i32
  }
  func.func @transform_2(%arg0: i32) -> (i32, i32) {
    %c0_i32 = arith.constant 0 : i32
    %c0_i32_0 = arith.constant 0 : i32
    %c0_i32_1 = arith.constant 0 : i32
    return %c0_i32, %c0_i32_0 : i32, i32
  }
  func.func @transform_3(%arg0: i32) -> (i32, i32) {
    %c0_i32 = arith.constant 0 : i32
    %c0_i32_0 = arith.constant 0 : i32
    return %arg0, %c0_i32 : i32, i32
  }
  func.func @transform_4(%arg0: i32) -> (i32, i32) {
    %c0_i32 = arith.constant 0 : i32
    %c0_i32_0 = arith.constant 0 : i32
    return %arg0, %c0_i32 : i32, i32
  }
}

</mosaic_0001>

<llo_original>
// kernel: tpu_custom_call.1
$region0: #{tpu_custom_call.1}
  #allocation0 [shape = 'u32[]', space=smem, size = 0x4, offset = 0x4, fixed_abs, tag = 'smem constant byte address 0x4 - core index']
  #allocation1 [shape = 'u32[72,128]{1,0:T(1,128)}', space=vmem, size = 0x9000, scoped, tag = 'internal scratch']
  %s0 = inlined_call_operand.vmem [shape: f32[128,32], index: 0, kind: input, shape index: {}]
  %s1 = inlined_call_operand.vmem [shape: f32[128,32], index: 1, kind: input, shape index: {}]
  %s2 = inlined_call_operand.vmem [shape: f32[128,1], index: 2, kind: input, shape index: {}]
  %s3 = inlined_call_operand.vmem [shape: f32[128,32], index: 3, kind: output, shape index: {0}]
  %s4 = inlined_call_operand.hbm [shape: s32[1,128], index: 4, kind: output, shape index: {1}]
  %5 = xla_tuple %s3, %s4
  %s6 = sld [smem:[#allocation0]]
  $region30: #{tpu_custom_call.1} parent=0
    _
  %s8 = ssub.s32 1, %s6
  %s9 = scalar_select 0, %s8, %s6
  $region1: #{tpu_custom_call.1} parent=0
    #allocation2 [shape = 'u8[512]{0}', space=vmem, size = 0x400, scoped, tag = 'output window, operand 1, single buffered']
    #allocation3 [shape = 's32[1]{0}', space=sflag, size = 0x4, scoped, tag = 'scoped memory for tpu_custom_call.1']
    %10 = vsyncpa [#allocation3], 0
    // Predicated region
    $region2: #{tpu_custom_call.1} parent=1 // pred_check
      _
    $region3: #{tpu_custom_call.1} parent=1 // pred_check_branch
      %12 = sbr.rel (0) target = $region5
    $region4: #{tpu_custom_call.1} parent=1 // pred_region
      _
    $region5: #{tpu_custom_call.1} parent=1 // pred_fallthru
      _
    // Predicated region
    $region6: #{tpu_custom_call.1} parent=1 // pred_check
      _
    $region7: #{tpu_custom_call.1} parent=1 // pred_check_branch
      %14 = sbr.rel (0) target = $region9
    $region8: #{tpu_custom_call.1} parent=1 // pred_region
      _
    $region9: #{tpu_custom_call.1} parent=1 // pred_fallthru
      _
    // Predicated region
    $region10: #{tpu_custom_call.1} parent=1 // pred_check
      _
    $region11: #{tpu_custom_call.1} parent=1 // pred_check_branch
      %16 = sbr.rel (0) target = $region13
    $region12: #{tpu_custom_call.1} parent=1 // pred_region
      _
    $region13: #{tpu_custom_call.1} parent=1 // pred_fallthru
      _
    %v17 = vld [vmem:[%s0] sm:$0xff]
    %v18 = vld [vmem:[%s0 + $0x8] sm:$0xff]
    %v19 = vld [vmem:[%s0 + $0x10] sm:$0xff]
    %v20 = vld [vmem:[%s0 + $0x18] sm:$0xff]
    %v21 = vld [vmem:[%s0 + $0x20] sm:$0xff]
    %v22 = vld [vmem:[%s0 + $0x28] sm:$0xff]
    %v23 = vld [vmem:[%s0 + $0x30] sm:$0xff]
    %v24 = vld [vmem:[%s0 + $0x38] sm:$0xff]
    %v25 = vld [vmem:[%s0 + $0x40] sm:$0xff]
    %v26 = vld [vmem:[%s0 + $0x48] sm:$0xff]
    %v27 = vld [vmem:[%s0 + $0x50] sm:$0xff]
    %v28 = vld [vmem:[%s0 + $0x58] sm:$0xff]
    %v29 = vld [vmem:[%s0 + $0x60] sm:$0xff]
    %v30 = vld [vmem:[%s0 + $0x68] sm:$0xff]
    %v31 = vld [vmem:[%s0 + $0x70] sm:$0xff]
    %v32 = vld [vmem:[%s0 + $0x78] sm:$0xff]
    %v33 = vld [vmem:[%s1] sm:$0xff]
    %v34 = vld [vmem:[%s1 + $0x8] sm:$0xff]
    %v35 = vld [vmem:[%s1 + $0x10] sm:$0xff]
    %v36 = vld [vmem:[%s1 + $0x18] sm:$0xff]
    %v37 = vld [vmem:[%s1 + $0x20] sm:$0xff]
    %v38 = vld [vmem:[%s1 + $0x28] sm:$0xff]
    %v39 = vld [vmem:[%s1 + $0x30] sm:$0xff]
    %v40 = vld [vmem:[%s1 + $0x38] sm:$0xff]
    %v41 = vld [vmem:[%s1 + $0x40] sm:$0xff]
    %v42 = vld [vmem:[%s1 + $0x48] sm:$0xff]
    %v43 = vld [vmem:[%s1 + $0x50] sm:$0xff]
    %v44 = vld [vmem:[%s1 + $0x58] sm:$0xff]
    %v45 = vld [vmem:[%s1 + $0x60] sm:$0xff]
    %v46 = vld [vmem:[%s1 + $0x68] sm:$0xff]
    %v47 = vld [vmem:[%s1 + $0x70] sm:$0xff]
    %v48 = vld [vmem:[%s1 + $0x78] sm:$0xff]
    %v49 = vld [vmem:[%s2] sm:$0xff]
    %v50 = vld [vmem:[%s2 + $0x8] sm:$0xff]
    %v51 = vld [vmem:[%s2 + $0x10] sm:$0xff]
    %v52 = vld [vmem:[%s2 + $0x18] sm:$0xff]
    %v53 = vld [vmem:[%s2 + $0x20] sm:$0xff]
    %v54 = vld [vmem:[%s2 + $0x28] sm:$0xff]
    %v55 = vld [vmem:[%s2 + $0x30] sm:$0xff]
    %v56 = vld [vmem:[%s2 + $0x38] sm:$0xff]
    %v57 = vld [vmem:[%s2 + $0x40] sm:$0xff]
    %v58 = vld [vmem:[%s2 + $0x48] sm:$0xff]
    %v59 = vld [vmem:[%s2 + $0x50] sm:$0xff]
    %v60 = vld [vmem:[%s2 + $0x58] sm:$0xff]
    %v61 = vld [vmem:[%s2 + $0x60] sm:$0xff]
    %v62 = vld [vmem:[%s2 + $0x68] sm:$0xff]
    %v63 = vld [vmem:[%s2 + $0x70] sm:$0xff]
    %v64 = vld [vmem:[%s2 + $0x78] sm:$0xff]
    %vm65 = vcmask 261120
    %v67 = vsel %vm65, %v33, 0
    %v70 = vsel %vm65, %v34, 0
    %v73 = vsel %vm65, %v35, 0
    %v76 = vsel %vm65, %v36, 0
    %v79 = vsel %vm65, %v37, 0
    %v82 = vsel %vm65, %v38, 0
    %v85 = vsel %vm65, %v39, 0
    %v88 = vsel %vm65, %v40, 0
    %v91 = vsel %vm65, %v41, 0
    %v94 = vsel %vm65, %v42, 0
    %v97 = vsel %vm65, %v43, 0
    %v100 = vsel %vm65, %v44, 0
    %v103 = vsel %vm65, %v45, 0
    %v106 = vsel %vm65, %v46, 0
    %v109 = vsel %vm65, %v47, 0
    %v112 = vsel %vm65, %v48, 0
    %v115 = vsel %vm65, %v17, 0
    %v118 = vsel %vm65, %v18, 0
    %v121 = vsel %vm65, %v19, 0
    %v124 = vsel %vm65, %v20, 0
    %v127 = vsel %vm65, %v21, 0
    %v130 = vsel %vm65, %v22, 0
    %v133 = vsel %vm65, %v23, 0
    %v136 = vsel %vm65, %v24, 0
    %v139 = vsel %vm65, %v25, 0
    %v142 = vsel %vm65, %v26, 0
    %v145 = vsel %vm65, %v27, 0
    %v148 = vsel %vm65, %v28, 0
    %v151 = vsel %vm65, %v29, 0
    %v154 = vsel %vm65, %v30, 0
    %v157 = vsel %vm65, %v31, 0
    %v160 = vsel %vm65, %v32, 0
    %162 = vmatpush.xpose.msra.mxu0 %v160
    %163 = vmatpush.xpose.msra.mxu0 %v157
    %164 = vmatpush.xpose.msra.mxu0 %v154
    %165 = vmatpush.xpose.msra.mxu0 %v151
    %166 = vmatpush.xpose.msra.mxu0 %v148
    %167 = vmatpush.xpose.msra.mxu0 %v145
    %168 = vmatpush.xpose.msra.mxu0 %v142
    %169 = vmatpush.xpose.msra.mxu0 %v139
    %170 = vmatpush.xpose.msra.mxu0 %v136
    %171 = vmatpush.xpose.msra.mxu0 %v133
    %172 = vmatpush.xpose.msra.mxu0 %v130
    %173 = vmatpush.xpose.msra.mxu0 %v127
    %174 = vmatpush.xpose.msra.mxu0 %v124
    %175 = vmatpush.xpose.msra.mxu0 %v121
    %176 = vmatpush.xpose.msra.mxu0 %v118
    %177 = vmatpush.xpose.msra.mxu0 %v115
    %178 = vmatmul.f32.gmra.mxu0 %v67
    %v179 = vpop.f32.mrf.mxu0
    %v180 = vadd.f32 0.0, %v179
    %181 = vmatmul.f32.gmra.mxu0 %v70
    %v182 = vpop.f32.mrf.mxu0
    %v183 = vadd.f32 0.0, %v182
    %184 = vmatmul.f32.gmra.mxu0 %v73
    %v185 = vpop.f32.mrf.mxu0
    %v186 = vadd.f32 0.0, %v185
    %187 = vmatmul.f32.gmra.mxu0 %v76
    %v188 = vpop.f32.mrf.mxu0
    %v189 = vadd.f32 0.0, %v188
    %190 = vmatmul.f32.gmra.mxu0 %v79
    %v191 = vpop.f32.mrf.mxu0
    %v192 = vadd.f32 0.0, %v191
    %193 = vmatmul.f32.gmra.mxu0 %v82
    %v194 = vpop.f32.mrf.mxu0
    %v195 = vadd.f32 0.0, %v194
    %196 = vmatmul.f32.gmra.mxu0 %v85
    %v197 = vpop.f32.mrf.mxu0
    %v198 = vadd.f32 0.0, %v197
    %199 = vmatmul.f32.gmra.mxu0 %v88
    %v200 = vpop.f32.mrf.mxu0
    %v201 = vadd.f32 0.0, %v200
    %202 = vmatmul.f32.gmra.mxu0 %v91
    %v203 = vpop.f32.mrf.mxu0
    %v204 = vadd.f32 0.0, %v203
    %205 = vmatmul.f32.gmra.mxu0 %v94
    %v206 = vpop.f32.mrf.mxu0
    %v207 = vadd.f32 0.0, %v206
    %208 = vmatmul.f32.gmra.mxu0 %v97
    %v209 = vpop.f32.mrf.mxu0
    %v210 = vadd.f32 0.0, %v209
    %211 = vmatmul.f32.gmra.mxu0 %v100
    %v212 = vpop.f32.mrf.mxu0
    %v213 = vadd.f32 0.0, %v212
    %214 = vmatmul.f32.gmra.mxu0 %v103
    %v215 = vpop.f32.mrf.mxu0
    %v216 = vadd.f32 0.0, %v215
    %217 = vmatmul.f32.gmra.mxu0 %v106
    %v218 = vpop.f32.mrf.mxu0
    %v219 = vadd.f32 0.0, %v218
    %220 = vmatmul.f32.gmra.mxu0 %v109
    %v221 = vpop.f32.mrf.mxu0
    %v222 = vadd.f32 0.0, %v221
    %223 = vmatmul.f32.gmra.mxu0 %v112
    %v224 = vpop.f32.mrf.mxu0
    %v225 = vadd.f32 0.0, %v224
    %226 = vdwg.mxu0
    %v227 = vmul.f32 %v180, 2.0
    %v228 = vmul.f32 %v183, 2.0
    %v229 = vmul.f32 %v186, 2.0
    %v230 = vmul.f32 %v189, 2.0
    %v231 = vmul.f32 %v192, 2.0
    %v232 = vmul.f32 %v195, 2.0
    %v233 = vmul.f32 %v198, 2.0
    %v234 = vmul.f32 %v201, 2.0
    %v235 = vmul.f32 %v204, 2.0
    %v236 = vmul.f32 %v207, 2.0
    %v237 = vmul.f32 %v210, 2.0
    %v238 = vmul.f32 %v213, 2.0
    %v239 = vmul.f32 %v216, 2.0
    %v240 = vmul.f32 %v219, 2.0
    %v241 = vmul.f32 %v222, 2.0
    %v242 = vmul.f32 %v225, 2.0
    %244 = vset.pattern.permute.xlu0 0
    %245 = vperm.xlu0 %244, %v49
    %v246 = vpop.permute.xlu0 %245
    %249 = vset.pattern.permute.xlu0 0
    %250 = vperm.xlu0 %249, %v50
    %v251 = vpop.permute.xlu0 %250
    %254 = vset.pattern.permute.xlu0 0
    %255 = vperm.xlu0 %254, %v51
    %v256 = vpop.permute.xlu0 %255
    %259 = vset.pattern.permute.xlu0 0
    %260 = vperm.xlu0 %259, %v52
    %v261 = vpop.permute.xlu0 %260
    %264 = vset.pattern.permute.xlu0 0
    %265 = vperm.xlu0 %264, %v53
    %v266 = vpop.permute.xlu0 %265
    %269 = vset.pattern.permute.xlu0 0
    %270 = vperm.xlu0 %269, %v54
    %v271 = vpop.permute.xlu0 %270
    %274 = vset.pattern.permute.xlu0 0
    %275 = vperm.xlu0 %274, %v55
    %v276 = vpop.permute.xlu0 %275
    %279 = vset.pattern.permute.xlu0 0
    %280 = vperm.xlu0 %279, %v56
    %v281 = vpop.permute.xlu0 %280
    %284 = vset.pattern.permute.xlu0 0
    %285 = vperm.xlu0 %284, %v57
    %v286 = vpop.permute.xlu0 %285
    %289 = vset.pattern.permute.xlu0 0
    %290 = vperm.xlu0 %289, %v58
    %v291 = vpop.permute.xlu0 %290
    %294 = vset.pattern.permute.xlu0 0
    %295 = vperm.xlu0 %294, %v59
    %v296 = vpop.permute.xlu0 %295
    %299 = vset.pattern.permute.xlu0 0
    %300 = vperm.xlu0 %299, %v60
    %v301 = vpop.permute.xlu0 %300
    %304 = vset.pattern.permute.xlu0 0
    %305 = vperm.xlu0 %304, %v61
    %v306 = vpop.permute.xlu0 %305
    %309 = vset.pattern.permute.xlu0 0
    %310 = vperm.xlu0 %309, %v62
    %v311 = vpop.permute.xlu0 %310
    %314 = vset.pattern.permute.xlu0 0
    %315 = vperm.xlu0 %314, %v63
    %v316 = vpop.permute.xlu0 %315
    %319 = vset.pattern.permute.xlu0 0
    %320 = vperm.xlu0 %319, %v64
    %v321 = vpop.permute.xlu0 %320
    %v323 = vsub.f32 %v246, %v227
    %v324 = vsub.f32 %v251, %v228
    %v325 = vsub.f32 %v256, %v229
    %v326 = vsub.f32 %v261, %v230
    %v327 = vsub.f32 %v266, %v231
    %v328 = vsub.f32 %v271, %v232
    %v329 = vsub.f32 %v276, %v233
    %v330 = vsub.f32 %v281, %v234
    %v331 = vsub.f32 %v286, %v235
    %v332 = vsub.f32 %v291, %v236
    %v333 = vsub.f32 %v296, %v237
    %v334 = vsub.f32 %v301, %v238
    %v335 = vsub.f32 %v306, %v239
    %v336 = vsub.f32 %v311, %v240
    %v337 = vsub.f32 %v316, %v241
    %v338 = vsub.f32 %v321, %v242
    %v339 = vmin.f32 %v323, %v327
    %v340 = vmin.f32 %v324, %v328
    %v341 = vmin.f32 %v325, %v329
    %v342 = vmin.f32 %v326, %v330
    %v343 = vmin.f32 %v339, %v331
    %v344 = vmin.f32 %v340, %v332
    %v345 = vmin.f32 %v341, %v333
    %v346 = vmin.f32 %v342, %v334
    %v347 = vmin.f32 %v343, %v335
    %v348 = vmin.f32 %v344, %v336
    %v349 = vmin.f32 %v345, %v337
    %v350 = vmin.f32 %v346, %v338
    %v351 = vmin.f32 %v347, %v348
    %v352 = vmin.f32 %v349, %v350
    %v353 = vmin.f32 %v351, %v352
    %v354 = vrot.slane %v353, 4
    %v355 = vmin.f32 %v353, %v354
    %v356 = vrot.slane %v355, 2
    %v357 = vmin.f32 %v355, %v356
    %v358 = vrot.slane %v357, 1
    %v359 = vmin.f32 %v357, %v358
    %v360 = vlaneseq
    %v361 = vshrl.u32 %v360, 7
    %v362 = vadd.s32 %v361, 8
    %v363 = vadd.s32 %v361, 16
    %v364 = vadd.s32 %v361, 24
    %v365 = vadd.s32 %v361, 32
    %v366 = vadd.s32 %v361, 40
    %v367 = vadd.s32 %v361, 48
    %v368 = vadd.s32 %v361, 56
    %v369 = vadd.s32 %v361, 64
    %v370 = vadd.s32 %v361, 72
    %v371 = vadd.s32 %v361, 80
    %v372 = vadd.s32 %v361, 88
    %v373 = vadd.s32 %v361, 96
    %v374 = vadd.s32 %v361, 104
    %v375 = vadd.s32 %v361, 112
    %v376 = vadd.s32 %v361, 120
    %vm377 = vcmp.eq.f32.partialorder %v323, %v359
    %vm378 = vcmp.eq.f32.partialorder %v324, %v359
    %vm379 = vcmp.eq.f32.partialorder %v325, %v359
    %vm380 = vcmp.eq.f32.partialorder %v326, %v359
    %vm381 = vcmp.eq.f32.partialorder %v327, %v359
    %vm382 = vcmp.eq.f32.partialorder %v328, %v359
    %vm383 = vcmp.eq.f32.partialorder %v329, %v359
    %vm384 = vcmp.eq.f32.partialorder %v330, %v359
    %vm385 = vcmp.eq.f32.partialorder %v331, %v359
    %vm386 = vcmp.eq.f32.partialorder %v332, %v359
    %vm387 = vcmp.eq.f32.partialorder %v333, %v359
    %vm388 = vcmp.eq.f32.partialorder %v334, %v359
    %vm389 = vcmp.eq.f32.partialorder %v335, %v359
    %vm390 = vcmp.eq.f32.partialorder %v336, %v359
    %vm391 = vcmp.eq.f32.partialorder %v337, %v359
    %vm392 = vcmp.eq.f32.partialorder %v338, %v359
    %v393 = vsel %vm377, %v361, 128
    %v394 = vsel %vm378, %v362, 128
    %v395 = vsel %vm379, %v363, 128
    %v396 = vsel %vm380, %v364, 128
    %v397 = vsel %vm381, %v365, 128
    %v398 = vsel %vm382, %v366, 128
    %v399 = vsel %vm383, %v367, 128
    %v400 = vsel %vm384, %v368, 128
    %v401 = vsel %vm385, %v369, 128
    %v402 = vsel %vm386, %v370, 128
    %v403 = vsel %vm387, %v371, 128
    %v404 = vsel %vm388, %v372, 128
    %v405 = vsel %vm389, %v373, 128
    %v406 = vsel %vm390, %v374, 128
    %v407 = vsel %vm391, %v375, 128
    %v408 = vsel %vm392, %v376, 128
    %vm409 = vcmp.lt.s32.totalorder %v393, %v397
    %v410 = vsel %vm409, %v393, %v397
    %vm411 = vcmp.lt.s32.totalorder %v394, %v398
    %v412 = vsel %vm411, %v394, %v398
    %vm413 = vcmp.lt.s32.totalorder %v395, %v399
    %v414 = vsel %vm413, %v395, %v399
    %vm415 = vcmp.lt.s32.totalorder %v396, %v400
    %v416 = vsel %vm415, %v396, %v400
    %vm417 = vcmp.lt.s32.totalorder %v410, %v401
    %v418 = vsel %vm417, %v410, %v401
    %vm419 = vcmp.lt.s32.totalorder %v412, %v402
    %v420 = vsel %vm419, %v412, %v402
    %vm421 = vcmp.lt.s32.totalorder %v414, %v403
    %v422 = vsel %vm421, %v414, %v403
    %vm423 = vcmp.lt.s32.totalorder %v416, %v404
    %v424 = vsel %vm423, %v416, %v404
    %vm425 = vcmp.lt.s32.totalorder %v418, %v405
    %v426 = vsel %vm425, %v418, %v405
    %vm427 = vcmp.lt.s32.totalorder %v420, %v406
    %v428 = vsel %vm427, %v420, %v406
    %vm429 = vcmp.lt.s32.totalorder %v422, %v407
    %v430 = vsel %vm429, %v422, %v407
    %vm431 = vcmp.lt.s32.totalorder %v424, %v408
    %v432 = vsel %vm431, %v424, %v408
    %vm433 = vcmp.lt.s32.totalorder %v426, %v428
    %v434 = vsel %vm433, %v426, %v428
    %vm435 = vcmp.lt.s32.totalorder %v430, %v432
    %v436 = vsel %vm435, %v430, %v432
    %vm437 = vcmp.lt.s32.totalorder %v434, %v436
    %v438 = vsel %vm437, %v434, %v436
    %v439 = vrot.slane %v438, 4
    %vm440 = vcmp.lt.s32.totalorder %v438, %v439
    %v441 = vsel %vm440, %v438, %v439
    %v442 = vrot.slane %v441, 2
    %vm443 = vcmp.lt.s32.totalorder %v441, %v442
    %v444 = vsel %vm443, %v441, %v442
    %v445 = vrot.slane %v444, 1
    %vm446 = vcmp.lt.s32.totalorder %v444, %v445
    %v447 = vsel %vm446, %v444, %v445
    %448 = vst [vmem:[#allocation2] sm:$0x1] %v447
    %vm449 = vcmp.eq.s32.totalorder %v361, %v447
    %vm450 = vcmp.eq.s32.totalorder %v362, %v447
    %vm451 = vcmp.eq.s32.totalorder %v363, %v447
    %vm452 = vcmp.eq.s32.totalorder %v364, %v447
    %vm453 = vcmp.eq.s32.totalorder %v365, %v447
    %vm454 = vcmp.eq.s32.totalorder %v366, %v447
    %vm455 = vcmp.eq.s32.totalorder %v367, %v447
    %vm456 = vcmp.eq.s32.totalorder %v368, %v447
    %vm457 = vcmp.eq.s32.totalorder %v369, %v447
    %vm458 = vcmp.eq.s32.totalorder %v370, %v447
    %vm459 = vcmp.eq.s32.totalorder %v371, %v447
    %vm460 = vcmp.eq.s32.totalorder %v372, %v447
    %vm461 = vcmp.eq.s32.totalorder %v373, %v447
    %vm462 = vcmp.eq.s32.totalorder %v374, %v447
    %vm463 = vcmp.eq.s32.totalorder %v375, %v447
    %vm464 = vcmp.eq.s32.totalorder %v376, %v447
    %v465 = vsel %vm449, 1, 0
    %v466 = vsel %vm450, 1, 0
    %v467 = vsel %vm451, 1, 0
    %v468 = vsel %vm452, 1, 0
    %v469 = vsel %vm453, 1, 0
    %v470 = vsel %vm454, 1, 0
    %v471 = vsel %vm455, 1, 0
    %v472 = vsel %vm456, 1, 0
    %v473 = vsel %vm457, 1, 0
    %v474 = vsel %vm458, 1, 0
    %v475 = vsel %vm459, 1, 0
    %v476 = vsel %vm460, 1, 0
    %v477 = vsel %vm461, 1, 0
    %v478 = vsel %vm462, 1, 0
    %v479 = vsel %vm463, 1, 0
    %v480 = vsel %vm464, 1, 0
    %v481 = vcvt.s32.f32 %v465
    %v482 = vcvt.s32.f32 %v466
    %v483 = vcvt.s32.f32 %v467
    %v484 = vcvt.s32.f32 %v468
    %v485 = vcvt.s32.f32 %v469
    %v486 = vcvt.s32.f32 %v470
    %v487 = vcvt.s32.f32 %v471
    %v488 = vcvt.s32.f32 %v472
    %v489 = vcvt.s32.f32 %v473
    %v490 = vcvt.s32.f32 %v474
    %v491 = vcvt.s32.f32 %v475
    %v492 = vcvt.s32.f32 %v476
    %v493 = vcvt.s32.f32 %v477
    %v494 = vcvt.s32.f32 %v478
    %v495 = vcvt.s32.f32 %v479
    %v496 = vcvt.s32.f32 %v480
    %497 = vxpose.xlu0.b32.start [1/16] %v481, 128
    %498 = vxpose.xlu0.b32.cont [2/16] %v482, 128
    %499 = vxpose.xlu0.b32.cont [3/16] %v483, 128
    %500 = vxpose.xlu0.b32.cont [4/16] %v484, 128
    %501 = vxpose.xlu0.b32.cont [5/16] %v485, 128
    %502 = vxpose.xlu0.b32.cont [6/16] %v486, 128
    %503 = vxpose.xlu0.b32.cont [7/16] %v487, 128
    %504 = vxpose.xlu0.b32.cont [8/16] %v488, 128
    %505 = vxpose.xlu0.b32.cont [9/16] %v489, 128
    %506 = vxpose.xlu0.b32.cont [10/16] %v490, 128
    %507 = vxpose.xlu0.b32.cont [11/16] %v491, 128
    %508 = vxpose.xlu0.b32.cont [12/16] %v492, 128
    %509 = vxpose.xlu0.b32.cont [13/16] %v493, 128
    %510 = vxpose.xlu0.b32.cont [14/16] %v494, 128
    %511 = vxpose.xlu0.b32.cont [15/16] %v495, 128
    %512 = vxpose.xlu0.b32.end [16/16] %v496, 128
    %v513 = vpop.trf.xlu0
    %v514 = vpop.trf.xlu0
    %v515 = vpop.trf.xlu0
    %v516 = vpop.trf.xlu0
    %v517 = vpop.trf.xlu0
    %v518 = vpop.trf.xlu0
    %v519 = vpop.trf.xlu0
    %v520 = vpop.trf.xlu0
    %v521 = vpop.trf.xlu0
    %v522 = vpop.trf.xlu0
    %v523 = vpop.trf.xlu0
    %v524 = vpop.trf.xlu0
    %v525 = vpop.trf.xlu0
    %v526 = vpop.trf.xlu0
    %v527 = vpop.trf.xlu0
    %v528 = vpop.trf.xlu0
    %529 = vmatpush.msra.mxu0 %v48
    %530 = vmatpush.msra.mxu0 %v47
    %531 = vmatpush.msra.mxu0 %v46
    %532 = vmatpush.msra.mxu0 %v45
    %533 = vmatpush.msra.mxu0 %v44
    %534 = vmatpush.msra.mxu0 %v43
    %535 = vmatpush.msra.mxu0 %v42
    %536 = vmatpush.msra.mxu0 %v41
    %537 = vmatpush.msra.mxu0 %v40
    %538 = vmatpush.msra.mxu0 %v39
    %539 = vmatpush.msra.mxu0 %v38
    %540 = vmatpush.msra.mxu0 %v37
    %541 = vmatpush.msra.mxu0 %v36
    %542 = vmatpush.msra.mxu0 %v35
    %543 = vmatpush.msra.mxu0 %v34
    %544 = vmatpush.msra.mxu0 %v33
    %545 = vmatmul.f32.gmra.mxu0 %v513
    %v546 = vpop.f32.mrf.mxu0
    %v547 = vadd.f32 0.0, %v546
    %548 = vmatmul.f32.gmra.mxu0 %v514
    %v549 = vpop.f32.mrf.mxu0
    %v550 = vadd.f32 0.0, %v549
    %551 = vmatmul.f32.gmra.mxu0 %v515
    %v552 = vpop.f32.mrf.mxu0
    %v553 = vadd.f32 0.0, %v552
    %554 = vmatmul.f32.gmra.mxu0 %v516
    %v555 = vpop.f32.mrf.mxu0
    %v556 = vadd.f32 0.0, %v555
    %557 = vmatmul.f32.gmra.mxu0 %v517
    %v558 = vpop.f32.mrf.mxu0
    %v559 = vadd.f32 0.0, %v558
    %560 = vmatmul.f32.gmra.mxu0 %v518
    %v561 = vpop.f32.mrf.mxu0
    %v562 = vadd.f32 0.0, %v561
    %563 = vmatmul.f32.gmra.mxu0 %v519
    %v564 = vpop.f32.mrf.mxu0
    %v565 = vadd.f32 0.0, %v564
    %566 = vmatmul.f32.gmra.mxu0 %v520
    %v567 = vpop.f32.mrf.mxu0
    %v568 = vadd.f32 0.0, %v567
    %569 = vmatmul.f32.gmra.mxu0 %v521
    %v570 = vpop.f32.mrf.mxu0
    %v571 = vadd.f32 0.0, %v570
    %572 = vmatmul.f32.gmra.mxu0 %v522
    %v573 = vpop.f32.mrf.mxu0
    %v574 = vadd.f32 0.0, %v573
    %575 = vmatmul.f32.gmra.mxu0 %v523
    %v576 = vpop.f32.mrf.mxu0
    %v577 = vadd.f32 0.0, %v576
    %578 = vmatmul.f32.gmra.mxu0 %v524
    %v579 = vpop.f32.mrf.mxu0
    %v580 = vadd.f32 0.0, %v579
    %581 = vmatmul.f32.gmra.mxu0 %v525
    %v582 = vpop.f32.mrf.mxu0
    %v583 = vadd.f32 0.0, %v582
    %584 = vmatmul.f32.gmra.mxu0 %v526
    %v585 = vpop.f32.mrf.mxu0
    %v586 = vadd.f32 0.0, %v585
    %587 = vmatmul.f32.gmra.mxu0 %v527
    %v588 = vpop.f32.mrf.mxu0
    %v589 = vadd.f32 0.0, %v588
    %590 = vmatmul.f32.gmra.mxu0 %v528
    %v591 = vpop.f32.mrf.mxu0
    %v592 = vadd.f32 0.0, %v591
    %593 = vdwg.mxu0
    %594 = vst.msk [vmem:[%s3] sm:$0xff] %vm65, %v547
    %595 = vst.msk [vmem:[%s3 + $0x8] sm:$0xff] %vm65, %v550
    %596 = vst.msk [vmem:[%s3 + $0x10] sm:$0xff] %vm65, %v553
    %597 = vst.msk [vmem:[%s3 + $0x18] sm:$0xff] %vm65, %v556
    %598 = vst.msk [vmem:[%s3 + $0x20] sm:$0xff] %vm65, %v559
    %599 = vst.msk [vmem:[%s3 + $0x28] sm:$0xff] %vm65, %v562
    %600 = vst.msk [vmem:[%s3 + $0x30] sm:$0xff] %vm65, %v565
    %601 = vst.msk [vmem:[%s3 + $0x38] sm:$0xff] %vm65, %v568
    %602 = vst.msk [vmem:[%s3 + $0x40] sm:$0xff] %vm65, %v571
    %603 = vst.msk [vmem:[%s3 + $0x48] sm:$0xff] %vm65, %v574
    %604 = vst.msk [vmem:[%s3 + $0x50] sm:$0xff] %vm65, %v577
    %605 = vst.msk [vmem:[%s3 + $0x58] sm:$0xff] %vm65, %v580
    %606 = vst.msk [vmem:[%s3 + $0x60] sm:$0xff] %vm65, %v583
    %607 = vst.msk [vmem:[%s3 + $0x68] sm:$0xff] %vm65, %v586
    %608 = vst.msk [vmem:[%s3 + $0x70] sm:$0xff] %vm65, %v589
    %609 = vst.msk [vmem:[%s3 + $0x78] sm:$0xff] %vm65, %v592
    // Predicated region
    $region14: #{tpu_custom_call.1} parent=1 // pred_check
      _
    $region15: #{tpu_custom_call.1} parent=1 // pred_check_branch
      %611 = sbr.rel (0) target = $region17
    $region16: #{tpu_custom_call.1} parent=1 // pred_region
      _
    $region17: #{tpu_custom_call.1} parent=1 // pred_fallthru
      _
    // Predicated region
    $region18: #{tpu_custom_call.1} parent=1 // pred_check
      _
    $region19: #{tpu_custom_call.1} parent=1 // pred_check_branch
      %613 = sbr.rel (0) target = $region21
    $region20: #{tpu_custom_call.1} parent=1 // pred_region
      %615 = vsyncadd [#allocation3], 0
      %s617 = sshll.u32 [#allocation2], 4
      %s618 = int_to_ptr.vmem [resolvable:$true] %s617
      %s619 = sshll.u32 %s4, 4
      %s620 = int_to_ptr.hbm [resolvable:$true] %s619
      %622 = dma.vmem_to_hbm [thread:$0]  %s618, 16, %s620, [#allocation3]
    $region21: #{tpu_custom_call.1} parent=1 // pred_fallthru
      _
    // Predicated region
    $region22: #{tpu_custom_call.1} parent=1 // pred_check
      _
    $region23: #{tpu_custom_call.1} parent=1 // pred_check_branch
      %624 = sbr.rel (0) target = $region25
    $region24: #{tpu_custom_call.1} parent=1 // pred_region
      _
    $region25: #{tpu_custom_call.1} parent=1 // pred_fallthru
      _
    // Predicated region
    $region26: #{tpu_custom_call.1} parent=1 // pred_check
      _
    $region27: #{tpu_custom_call.1} parent=1 // pred_check_branch
      %626 = sbr.rel (0) target = $region29
    $region28: #{tpu_custom_call.1} parent=1 // pred_region
      %628 = dma.done [#allocation3], 16
    $region29: #{tpu_custom_call.1} parent=1 // pred_fallthru
      _
    %629 = vsyncpa [#allocation3], 1

</llo_original>
